<compile_context>
chip_gen: v6e
topology: v6e:2x2x1
jax: 0.10.0
libtpu: 0.0.40
codegen_flags: <defaults>
</compile_context>

<pallas_src>
import functools

import jax
import jax.numpy as jnp
from jax.experimental import pallas as pl
from jax.experimental.pallas import tpu as pltpu


def _label_smoothing_kernel(pred_ref, tgt_ref, out_ref, *,
                            confidence, smooth_val, n_valid):
    i = pl.program_id(0)

    x = pred_ref[...].astype(jnp.float32)            # (tile, C)
    tile = x.shape[0]

    # log_softmax along the last (lane) axis, numerically stable.
    m = jnp.max(x, axis=-1, keepdims=True)                       # XLU reduce
    lse = jnp.log(jnp.sum(jnp.exp(x - m), axis=-1, keepdims=True)) + m
    logp = x - lse                                               # (tile, C)

    # Smoothed target distribution: smoothing/(C-1) everywhere, confidence at target.
    col = jax.lax.broadcasted_iota(jnp.int32, x.shape, 1)        # (tile, C)
    is_tgt = col == tgt_ref[...]                                 # (tile, 1) broadcast
    true_dist = jnp.where(is_tgt, confidence, smooth_val)

    # Per-row loss; zero out padded rows (global row id >= n_valid).
    row_loss = jnp.sum(-true_dist * logp, axis=-1, keepdims=True)        # (tile, 1)
    row_ids = i * tile + jax.lax.broadcasted_iota(jnp.int32, (tile, 1), 0)
    out_ref[...] = jnp.where(row_ids < n_valid, row_loss, 0.0)


def _choose_tile_rows(n, c, itemsize):
    """Row tile giving ~2 MiB pred blocks, capped at 4 MiB, multiple of 8 rows."""
    target_bytes = 2 * 1024 * 1024
    max_bytes = 4 * 1024 * 1024
    rows = max(8, (target_bytes // (c * itemsize)) // 8 * 8)
    rows_cap = max(8, (max_bytes // (c * itemsize)) // 8 * 8)
    rows = min(rows, rows_cap)
    n_pad8 = ((n + 7) // 8) * 8
    return max(8, min(rows, n_pad8))


def label_smoothing_loss(pred, target, *, classes, smoothing, tile_rows=None):
    """pred: (N, C) float32/bfloat16, target: (N,) int. Returns scalar f32 mean loss."""
    N, C = pred.shape
    assert C == classes
    confidence = 1.0 - smoothing
    smooth_val = smoothing / (classes - 1)

    itemsize = jnp.dtype(pred.dtype).itemsize
    if tile_rows is None:
        tile_rows = _choose_tile_rows(N, C, itemsize)

    n_pad = ((N + tile_rows - 1) // tile_rows) * tile_rows
    if n_pad != N:
        pred = jnp.pad(pred, ((0, n_pad - N), (0, 0)))
        target = jnp.pad(target, (0, n_pad - N))
    tgt2d = target.astype(jnp.int32).reshape(n_pad, 1)

    kernel = functools.partial(
        _label_smoothing_kernel,
        confidence=float(confidence),
        smooth_val=float(smooth_val),
        n_valid=int(N),
    )

    per_row = pl.pallas_call(
        kernel,
        out_shape=jax.ShapeDtypeStruct((n_pad, 1), jnp.float32),
        grid_spec=pltpu.PrefetchScalarGridSpec(
            num_scalar_prefetch=0,
            grid=(n_pad // tile_rows,),
            in_specs=[
                pl.BlockSpec((tile_rows, C), lambda i: (i, 0)),
                pl.BlockSpec((tile_rows, 1), lambda i: (i, 0)),
            ],
            out_specs=pl.BlockSpec((tile_rows, 1), lambda i: (i, 0)),
        ),
        compiler_params=pltpu.CompilerParams(
            dimension_semantics=("parallel",),
        ),
    )(pred, tgt2d)

    # Tiny epilogue reduce + mean in JAX (padded rows already zeroed in-kernel).
    return jnp.sum(per_row) / jnp.float32(N)


def _reference(pred, target, classes, smoothing):
    confidence = 1.0 - smoothing
    logp = jax.nn.log_softmax(pred.astype(jnp.float32), axis=-1)
    true_dist = jnp.full_like(logp, smoothing / (classes - 1))
    true_dist = true_dist.at[jnp.arange(pred.shape[0]), target].set(confidence)
    return jnp.mean(jnp.sum(-true_dist * logp, axis=-1))


if __name__ == "__main__":
    classes = 32
    smoothing = 0.1
    N = 30  # non-multiple of 8 to exercise padding + in-kernel masking

    key = jax.random.PRNGKey(0)
    kp, kt = jax.random.split(key)
    pred = jax.random.normal(kp, (N, classes), dtype=jnp.float32)
    target = jax.random.randint(kt, (N,), 0, classes, dtype=jnp.int32)

    loss = label_smoothing_loss(pred, target, classes=classes, smoothing=smoothing)
    loss = jax.block_until_ready(loss)

    ref = _reference(pred, target, classes, smoothing)
    assert jnp.allclose(loss, ref, atol=1e-5, rtol=1e-5), (loss, ref)

    print("KERNEL_OK")
</pallas_src>

<mosaic_0001>
module attributes {stable_mosaic.version = 11 : i64} {
  func.func @_label_smoothing_kernel(%arg0: i32, %arg1: memref<32x32xf32, #tpu.memory_space<vmem>>, %arg2: memref<32x1xi32, #tpu.memory_space<vmem>>, %arg3: memref<32x1xf32, #tpu.memory_space<vmem>>) attributes {dimension_semantics = [#tpu.dimension_semantics<parallel>], iteration_bounds = array<i64: 1>, scalar_prefetch = 0 : i64, scratch_operands = 0 : i64, tpu.core_type = #tpu.core_type<tc>, window_params = [{transform_indices = @transform_0, window_bounds = array<i64: 32, 32>}, {transform_indices = @transform_1, window_bounds = array<i64: 32, 1>}, {transform_indices = @transform_2, window_bounds = array<i64: 32, 1>}]} {
    %c0 = arith.constant 0 : index
    %c0_0 = arith.constant 0 : index
    %0 = vector.load %arg1[%c0, %c0_0] : memref<32x32xf32, #tpu.memory_space<vmem>>, vector<32x32xf32>
    %cst = arith.constant dense<0xFF800000> : vector<32xf32>
    %1 = vector.multi_reduction <maximumf>, %0, %cst [1] : vector<32x32xf32> to vector<32xf32>
    %2 = vector.shape_cast %1 : vector<32xf32> to vector<32x1xf32>
    %3 = vector.broadcast %2 : vector<32x1xf32> to vector<32x32xf32>
    %4 = arith.subf %0, %3 : vector<32x32xf32>
    %5 = math.exp %4 : vector<32x32xf32>
    %cst_1 = arith.constant dense<0.000000e+00> : vector<32xf32>
    %6 = vector.multi_reduction <add>, %5, %cst_1 [1] : vector<32x32xf32> to vector<32xf32>
    %7 = vector.shape_cast %6 : vector<32xf32> to vector<32x1xf32>
    %8 = math.log %7 : vector<32x1xf32>
    %9 = arith.addf %8, %2 : vector<32x1xf32>
    %10 = vector.broadcast %9 : vector<32x1xf32> to vector<32x32xf32>
    %11 = arith.subf %0, %10 : vector<32x32xf32>
    %12 = tpu.iota {dimensions = array<i32: 1>} : vector<32x32xi32>
    %c0_2 = arith.constant 0 : index
    %c0_3 = arith.constant 0 : index
    %13 = vector.load %arg2[%c0_2, %c0_3] : memref<32x1xi32, #tpu.memory_space<vmem>>, vector<32x1xi32>
    %14 = vector.broadcast %13 : vector<32x1xi32> to vector<32x32xi32>
    %15 = arith.cmpi eq, %12, %14 : vector<32x32xi32>
    %cst_4 = arith.constant 0.899999976 : f32
    %cst_5 = arith.constant 0.0032258064 : f32
    %16 = vector.broadcast %cst_4 : f32 to vector<32x32xf32>
    %17 = vector.broadcast %cst_5 : f32 to vector<32x32xf32>
    %18 = arith.select %15, %16, %17 : vector<32x32xi1>, vector<32x32xf32>
    %cst_6 = arith.constant 0.000000e+00 : f32
    %19 = vector.broadcast %cst_6 : f32 to vector<32x32xf32>
    %20 = arith.subf %19, %18 : vector<32x32xf32>
    %21 = arith.mulf %20, %11 : vector<32x32xf32>
    %cst_7 = arith.constant dense<0.000000e+00> : vector<32xf32>
    %22 = vector.multi_reduction <add>, %21, %cst_7 [1] : vector<32x32xf32> to vector<32xf32>
    %23 = vector.shape_cast %22 : vector<32xf32> to vector<32x1xf32>
    %c32_i32 = arith.constant 32 : i32
    %24 = arith.muli %arg0, %c32_i32 : i32
    %25 = tpu.iota {dimensions = array<i32: 0>} : vector<32x1xi32>
    %26 = vector.broadcast %24 : i32 to vector<32x1xi32>
    %27 = arith.addi %26, %25 : vector<32x1xi32>
    %c30_i32 = arith.constant 30 : i32
    %28 = vector.broadcast %c30_i32 : i32 to vector<32x1xi32>
    %29 = arith.cmpi slt, %27, %28 : vector<32x1xi32>
    %cst_8 = arith.constant 0.000000e+00 : f32
    %30 = vector.broadcast %cst_8 : f32 to vector<32x1xf32>
    %31 = arith.select %29, %23, %30 : vector<32x1xi1>, vector<32x1xf32>
    %c0_9 = arith.constant 0 : index
    %c0_10 = arith.constant 0 : index
    %32 = vector.load %arg3[%c0_9, %c0_10] : memref<32x1xf32, #tpu.memory_space<vmem>>, vector<32x1xf32>
    tpu.vector_store %arg3[%c0_9, %c0_10], %31 {strides = array<i32>} : memref<32x1xf32, #tpu.memory_space<vmem>>, vector<32x1xf32>,
    return
  }
  func.func @transform_0(%arg0: i32) -> (i32, i32) {
    %c0_i32 = arith.constant 0 : i32
    %c0_i32_0 = arith.constant 0 : i32
    return %arg0, %c0_i32 : i32, i32
  }
  func.func @transform_1(%arg0: i32) -> (i32, i32) {
    %c0_i32 = arith.constant 0 : i32
    %c0_i32_0 = arith.constant 0 : i32
    return %arg0, %c0_i32 : i32, i32
  }
  func.func @transform_2(%arg0: i32) -> (i32, i32) {
    %c0_i32 = arith.constant 0 : i32
    %c0_i32_0 = arith.constant 0 : i32
    return %arg0, %c0_i32 : i32, i32
  }
}

</mosaic_0001>

<llo_original>
// kernel: tpu_custom_call.1
$region0: #{tpu_custom_call.1}
  #allocation0 [shape = 'u32[]', space=smem, size = 0x4, offset = 0x4, fixed_abs, tag = 'smem constant byte address 0x4 - core index']
  #allocation1 [shape = 'u32[144,128]{1,0:T(1,128)}', space=vmem, size = 0x12000, scoped, tag = 'internal scratch']
  %s0 = inlined_call_operand.vmem [shape: f32[32,32], index: 0, kind: input, shape index: {}]
  %s1 = inlined_call_operand.vmem [shape: s32[32,1], index: 1, kind: input, shape index: {}]
  %s2 = inlined_call_operand.vmem [shape: f32[32,1], index: 2, kind: output, shape index: {}]
  %s3 = sld [smem:[#allocation0]]
  $region18: #{tpu_custom_call.1} parent=0
    _
  %s5 = ssub.s32 1, %s3
  %s6 = scalar_select 0, %s5, %s3
  // Predicated region
  $region2: #{tpu_custom_call.1} parent=0 // pred_check
    _
  $region3: #{tpu_custom_call.1} parent=0 // pred_check_branch
    %8 = sbr.rel (0) target = $region5
  $region4: #{tpu_custom_call.1} parent=0 // pred_region
    _
  $region5: #{tpu_custom_call.1} parent=0 // pred_fallthru
    _
  // Predicated region
  $region6: #{tpu_custom_call.1} parent=0 // pred_check
    _
  $region7: #{tpu_custom_call.1} parent=0 // pred_check_branch
    %10 = sbr.rel (0) target = $region9
  $region8: #{tpu_custom_call.1} parent=0 // pred_region
    _
  $region9: #{tpu_custom_call.1} parent=0 // pred_fallthru
    _
  %v11 = vld [vmem:[%s0] sm:$0xff]
  %v12 = vld [vmem:[%s0 + $0x8] sm:$0xff]
  %v13 = vld [vmem:[%s0 + $0x10] sm:$0xff]
  %v14 = vld [vmem:[%s0 + $0x18] sm:$0xff]
  %vm15 = vcmask 261120
  %v16 = vsel %vm15, %v11, -inf
  %17 = vmax.xlane.f32.xlu0 %v16
  %v18 = vpop.xlane.xlu0 %17
  %v19 = vsel %vm15, %v12, -inf
  %20 = vmax.xlane.f32.xlu0 %v19
  %v21 = vpop.xlane.xlu0 %20
  %v22 = vsel %vm15, %v13, -inf
  %23 = vmax.xlane.f32.xlu0 %v22
  %v24 = vpop.xlane.xlu0 %23
  %v25 = vsel %vm15, %v14, -inf
  %26 = vmax.xlane.f32.xlu0 %v25
  %v27 = vpop.xlane.xlu0 %26
  %v28 = vsub.f32 %v11, %v18
  %v29 = vsub.f32 %v12, %v21
  %v30 = vsub.f32 %v13, %v24
  %v31 = vsub.f32 %v14, %v27
  %v32 = vmul.f32 %v28, 1.442695
  %v33 = vpow.pop %v32
  %v34 = vmul.f32 %v29, 1.442695
  %v35 = vpow.pop %v34
  %v36 = vmul.f32 %v30, 1.442695
  %v37 = vpow.pop %v36
  %v38 = vmul.f32 %v31, 1.442695
  %v39 = vpow.pop %v38
  %v40 = vsel %vm15, %v33, 0.0
  %41 = vadd.xlane.f32.xlu0 %v40
  %v42 = vpop.xlane.xlu0 %41
  %v43 = vsel %vm15, %v35, 0.0
  %44 = vadd.xlane.f32.xlu0 %v43
  %v45 = vpop.xlane.xlu0 %44
  %v46 = vsel %vm15, %v37, 0.0
  %47 = vadd.xlane.f32.xlu0 %v46
  %v48 = vpop.xlane.xlu0 %47
  %v49 = vsel %vm15, %v39, 0.0
  %50 = vadd.xlane.f32.xlu0 %v49
  %v51 = vpop.xlane.xlu0 %50
  %v52 = vlog2.pop %v42
  %v53 = vmul.f32 %v52, 0.6931472
  %v54 = vlog2.pop %v45
  %v55 = vmul.f32 %v54, 0.6931472
  %v56 = vlog2.pop %v48
  %v57 = vmul.f32 %v56, 0.6931472
  %v58 = vlog2.pop %v51
  %v59 = vmul.f32 %v58, 0.6931472
  %v60 = vadd.f32 %v53, %v18
  %v61 = vadd.f32 %v55, %v21
  %v62 = vadd.f32 %v57, %v24
  %v63 = vadd.f32 %v59, %v27
  %v64 = vsub.f32 %v11, %v60
  %v65 = vsub.f32 %v12, %v61
  %v66 = vsub.f32 %v13, %v62
  %v67 = vsub.f32 %v14, %v63
  %v68 = vlaneseq
  %v69 = vand.u32 %v68, 127
  %v70 = vld [vmem:[%s1] sm:$0xff]
  %v71 = vld [vmem:[%s1 + $0x8] sm:$0xff]
  %v72 = vld [vmem:[%s1 + $0x10] sm:$0xff]
  %v73 = vld [vmem:[%s1 + $0x18] sm:$0xff]
  %74 = vset.pattern.permute.xlu0 0
  %75 = vperm.xlu0 %74, %v70
  %v76 = vpop.permute.xlu0 %75
  %77 = vset.pattern.permute.xlu0 0
  %78 = vperm.xlu0 %77, %v71
  %v79 = vpop.permute.xlu0 %78
  %80 = vset.pattern.permute.xlu0 0
  %81 = vperm.xlu0 %80, %v72
  %v82 = vpop.permute.xlu0 %81
  %83 = vset.pattern.permute.xlu0 0
  %84 = vperm.xlu0 %83, %v73
  %v85 = vpop.permute.xlu0 %84
  %vm86 = vcmp.eq.s32.totalorder %v69, %v76
  %vm87 = vcmp.eq.s32.totalorder %v69, %v79
  %vm88 = vcmp.eq.s32.totalorder %v69, %v82
  %vm89 = vcmp.eq.s32.totalorder %v69, %v85
  %v90 = vsel %vm86, 0.9, 0.0032258064
  %v91 = vsel %vm87, 0.9, 0.0032258064
  %v92 = vsel %vm88, 0.9, 0.0032258064
  %v93 = vsel %vm89, 0.9, 0.0032258064
  %v94 = vsub.f32 0.0, %v90
  %v95 = vsub.f32 0.0, %v91
  %v96 = vsub.f32 0.0, %v92
  %v97 = vsub.f32 0.0, %v93
  %v98 = vmul.f32 %v94, %v64
  %v99 = vmul.f32 %v95, %v65
  %v100 = vmul.f32 %v96, %v66
  %v101 = vmul.f32 %v97, %v67
  %v102 = vsel %vm15, %v98, 0.0
  %103 = vadd.xlane.f32.xlu0 %v102
  %v104 = vpop.xlane.xlu0 %103
  %v105 = vsel %vm15, %v99, 0.0
  %106 = vadd.xlane.f32.xlu0 %v105
  %v107 = vpop.xlane.xlu0 %106
  %v108 = vsel %vm15, %v100, 0.0
  %109 = vadd.xlane.f32.xlu0 %v108
  %v110 = vpop.xlane.xlu0 %109
  %v111 = vsel %vm15, %v101, 0.0
  %112 = vadd.xlane.f32.xlu0 %v111
  %v113 = vpop.xlane.xlu0 %112
  %s114 = smul.u32 0, 32
  %v115 = vlaneseq
  %v116 = vshrl.u32 %v115, 7
  %v117 = vadd.s32 %v116, 8
  %v118 = vadd.s32 %v116, 16
  %v119 = vadd.s32 %v116, 24
  %v120 = vstv %s114
  %v121 = vadd.s32 %v120, %v116
  %v122 = vadd.s32 %v120, %v117
  %v123 = vadd.s32 %v120, %v118
  %v124 = vadd.s32 %v120, %v119
  %vm125 = vcmp.lt.s32.totalorder %v121, 30
  %vm126 = vcmp.lt.s32.totalorder %v122, 30
  %vm127 = vcmp.lt.s32.totalorder %v123, 30
  %vm128 = vcmp.lt.s32.totalorder %v124, 30
  %v129 = vsel %vm125, %v104, 0.0
  %v130 = vsel %vm126, %v107, 0.0
  %v131 = vsel %vm127, %v110, 0.0
  %v132 = vsel %vm128, %v113, 0.0
  %vm133 = vcmask 7168
  %134 = vst.msk [vmem:[%s2] sm:$0xff] %vm133, %v129
  %135 = vst.msk [vmem:[%s2 + $0x8] sm:$0xff] %vm133, %v130
  %136 = vst.msk [vmem:[%s2 + $0x10] sm:$0xff] %vm133, %v131
  %137 = vst.msk [vmem:[%s2 + $0x18] sm:$0xff] %vm133, %v132
  // Predicated region
  $region10: #{tpu_custom_call.1} parent=0 // pred_check
    _
  $region11: #{tpu_custom_call.1} parent=0 // pred_check_branch
    %139 = sbr.rel (0) target = $region13
  $region12: #{tpu_custom_call.1} parent=0 // pred_region
    _
  $region13: #{tpu_custom_call.1} parent=0 // pred_fallthru
    _
  // Predicated region
  $region14: #{tpu_custom_call.1} parent=0 // pred_check
    _
  $region15: #{tpu_custom_call.1} parent=0 // pred_check_branch
    %141 = sbr.rel (0) target = $region17
  $region16: #{tpu_custom_call.1} parent=0 // pred_region
    _
  $region17: #{tpu_custom_call.1} parent=0 // pred_fallthru
    _

</llo_original>
